<compile_context>
chip_gen: v7x
topology: tpu7x:2x2x1
jax: 0.10.0
libtpu: 0.0.40
codegen_flags: <defaults>
</compile_context>

<pallas_src>
import functools

import jax
import jax.numpy as jnp
from jax import lax
from jax.experimental import pallas as pl
from jax.experimental.pallas import tpu as pltpu

LANES = 128


def _round_up(x, m):
    return ((x + m - 1) // m) * m


def _mask_l1_kernel(pred_ref, gt_ref, mask_ref, num_ref, den_ref, *,
                    n_rows, nb_half, block_rows, needs_mask):
    c = pl.program_id(0)   # which half (TensorCore on v7x)
    j = pl.program_id(1)   # row block within the half (reduction axis)

    @pl.when(j == 0)
    def _():
        num_ref[...] = jnp.zeros_like(num_ref)
        den_ref[...] = jnp.zeros_like(den_ref)

    p = pred_ref[...].astype(jnp.float32)
    g = gt_ref[...].astype(jnp.float32)
    m = mask_ref[...].astype(jnp.float32)

    num_blk = jnp.abs(p - g) * m
    den_blk = m

    if needs_mask:
        # Ragged / odd tiling fallback: zero out rows past the logical end.
        # Masking is applied AFTER the multiply so undefined (possibly NaN)
        # boundary data can never leak into the sums.
        row_start = (c * nb_half + j) * block_rows
        row_ids = row_start + lax.broadcasted_iota(
            jnp.int32, (block_rows, LANES), 0)
        valid = row_ids < n_rows
        num_blk = jnp.where(valid, num_blk, 0.0)
        den_blk = jnp.where(valid, den_blk, 0.0)

    # Keep partial sums vreg-shaped (8,128): per-step VPU adds only; the
    # expensive cross-lane reduction happens exactly once, in the wrapper.
    num_ref[...] += jnp.sum(num_blk.reshape(-1, 8, LANES), axis=0,
                            keepdims=True)
    den_ref[...] += jnp.sum(den_blk.reshape(-1, 8, LANES), axis=0,
                            keepdims=True)


def mask_l1_loss(prediction, gt, mask, eps: float = 1e-6,
                 max_block_rows: int = 2048):
    """Pallas equivalent of MaskL1Loss.forward. Returns a scalar float32."""
    assert prediction.shape == gt.shape == mask.shape
    total = prediction.size

    # Sublane granularity for the narrowest input dtype (8 rows for 4-byte,
    # 16 for 2-byte, 32 for 1-byte packed dtypes).
    min_sub = 8
    for a in (prediction, gt, mask):
        itemsize = jnp.dtype(a.dtype).itemsize
        min_sub = max(min_sub, {4: 8, 2: 16, 1: 32}.get(itemsize, 8))

    tile = min_sub * LANES
    padded_total = _round_up(total, tile)
    pad = padded_total - total

    def _prep(x):
        x = x.reshape(-1)          # contiguous reshape: no copy, native dtype
        if pad:
            # Rare fallback: minimal zero pad (mask pad == 0 keeps sums exact).
            x = jnp.pad(x, (0, pad))
        return x.reshape(padded_total // LANES, LANES)

    p2, g2, m2 = _prep(prediction), _prep(gt), _prep(mask)
    n_rows = padded_total // LANES

    # ---- Block-size selection -------------------------------------------
    br_max = min(_round_up(max_block_rows, min_sub), n_rows)
    br = br_max
    needs_mask = not (n_rows % br == 0 and (n_rows // br) % 2 == 0)
    if needs_mask:
        # Prefer a (not much smaller) block that tiles n_rows exactly into an
        # even number of blocks: no in-kernel masking, no phantom block.
        lo = max(min_sub, br_max // 2)
        for cand in range(br_max - min_sub, lo - 1, -min_sub):
            if n_rows % cand == 0 and (n_rows // cand) % 2 == 0:
                br, needs_mask = cand, False
                break

    nb = pl.cdiv(n_rows, br)       # total row blocks
    nb_half = pl.cdiv(nb, 2)       # blocks per half / core

    def in_map(c, j):
        b = c * nb_half + j
        # Clamp a fully out-of-range block (odd nb, second half's last step);
        # its contribution is zeroed by the in-kernel validity mask.
        return (jnp.minimum(b, nb - 1), 0)

    in_spec = pl.BlockSpec((br, LANES), in_map)
    out_spec = pl.BlockSpec((1, 8, LANES), lambda c, j: (c, 0, 0))

    num_part, den_part = pl.pallas_call(
        functools.partial(_mask_l1_kernel, n_rows=n_rows, nb_half=nb_half,
                          block_rows=br, needs_mask=needs_mask),
        out_shape=(jax.ShapeDtypeStruct((2, 8, LANES), jnp.float32),
                   jax.ShapeDtypeStruct((2, 8, LANES), jnp.float32)),
        grid_spec=pltpu.PrefetchScalarGridSpec(
            num_scalar_prefetch=0,
            grid=(2, nb_half),
            in_specs=[in_spec, in_spec, in_spec],
            out_specs=(out_spec, out_spec),
        ),
        compiler_params=pltpu.CompilerParams(
            dimension_semantics=("parallel", "arbitrary"),
        ),
    )(p2, g2, m2)

    num = jnp.sum(num_part)
    den = jnp.sum(den_part)
    return num / (den + eps)


def _reference(prediction, gt, mask, eps=1e-6):
    p = prediction.astype(jnp.float32)
    g = gt.astype(jnp.float32)
    m = mask.astype(jnp.float32)
    return (jnp.abs(p - g) * m).sum() / (m.sum() + eps)


if __name__ == "__main__":
    key = jax.random.PRNGKey(0)
    k1, k2, k3 = jax.random.split(key, 3)

    # 1) Shapes consistent with DBNet threshold-map loss usage (N, C, H, W).
    #    Exercises the exact-even-tiling (no in-kernel mask) fast path.
    shape = (2, 4, 16, 16)
    prediction = jax.random.uniform(k1, shape, dtype=jnp.float32)
    gt = jax.random.uniform(k2, shape, dtype=jnp.float32)
    mask = (jax.random.uniform(k3, shape) > 0.5).astype(jnp.float32)

    loss = jax.block_until_ready(mask_l1_loss(prediction, gt, mask))
    ref = _reference(prediction, gt, mask)
    assert jnp.allclose(loss, ref, rtol=1e-4, atol=1e-6), (loss, ref)

    # 2) Ragged path: element count not a multiple of the sublane tile
    #    (zero pad in the wrapper, still no in-kernel mask).
    shape2 = (2, 3, 15, 17)
    p_r = jax.random.uniform(k1, shape2, dtype=jnp.float32)
    g_r = jax.random.uniform(k2, shape2, dtype=jnp.float32)
    m_r = (jax.random.uniform(k3, shape2) > 0.5).astype(jnp.float32)
    loss_r = jax.block_until_ready(mask_l1_loss(p_r, g_r, m_r))
    ref_r = _reference(p_r, g_r, m_r)
    assert jnp.allclose(loss_r, ref_r, rtol=1e-4, atol=1e-6), (loss_r, ref_r)

    # 3) Odd block count that cannot be split evenly -> exercises the
    #    in-kernel validity-mask fallback (phantom block on the second half).
    shape3 = (1, 3, 32, 32)
    p_o = jax.random.uniform(k1, shape3, dtype=jnp.float32)
    g_o = jax.random.uniform(k2, shape3, dtype=jnp.float32)
    m_o = (jax.random.uniform(k3, shape3) > 0.5).astype(jnp.float32)
    loss_o = jax.block_until_ready(mask_l1_loss(p_o, g_o, m_o))
    ref_o = _reference(p_o, g_o, m_o)
    assert jnp.allclose(loss_o, ref_o, rtol=1e-4, atol=1e-6), (loss_o, ref_o)

    print("KERNEL_OK")
</pallas_src>

<mosaic_0001>
module attributes {stable_mosaic.version = 11 : i64} {
  func.func @_mask_l1_kernel(%arg0: i32, %arg1: i32, %arg2: memref<8x128xf32, #tpu.memory_space<vmem>>, %arg3: memref<8x128xf32, #tpu.memory_space<vmem>>, %arg4: memref<8x128xf32, #tpu.memory_space<vmem>>, %arg5: memref<1x8x128xf32, #tpu.memory_space<vmem>>, %arg6: memref<1x8x128xf32, #tpu.memory_space<vmem>>) attributes {dimension_semantics = [#tpu.dimension_semantics<parallel>, #tpu.dimension_semantics<arbitrary>], iteration_bounds = array<i64: 2, 1>, scalar_prefetch = 0 : i64, scratch_operands = 0 : i64, tpu.core_type = #tpu.core_type<tc>, window_params = [{transform_indices = @transform_0, window_bounds = array<i64: 8, 128>}, {transform_indices = @transform_1, window_bounds = array<i64: 8, 128>}, {transform_indices = @transform_2, window_bounds = array<i64: 8, 128>}, {transform_indices = @transform_3, window_bounds = array<i64: 1, 8, 128>}, {transform_indices = @transform_4, window_bounds = array<i64: 1, 8, 128>}]} {
    %c0_i32 = arith.constant 0 : i32
    %0 = arith.cmpi eq, %arg1, %c0_i32 : i32
    %1 = arith.extui %0 : i1 to i32
    %c0_i32_0 = arith.constant 0 : i32
    %2 = arith.cmpi ne, %1, %c0_i32_0 : i32
    scf.if %2 {
      %cst_19 = arith.constant 0.000000e+00 : f32
      %21 = vector.broadcast %cst_19 : f32 to vector<1x8x128xf32>
      %c0_20 = arith.constant 0 : index
      %c0_21 = arith.constant 0 : index
      %c0_22 = arith.constant 0 : index
      %22 = vector.load %arg5[%c0_20, %c0_21, %c0_22] : memref<1x8x128xf32, #tpu.memory_space<vmem>>, vector<1x8x128xf32>
      tpu.vector_store %arg5[%c0_20, %c0_21, %c0_22], %21 {strides = array<i32>} : memref<1x8x128xf32, #tpu.memory_space<vmem>>, vector<1x8x128xf32>,
      %cst_23 = arith.constant 0.000000e+00 : f32
      %23 = vector.broadcast %cst_23 : f32 to vector<1x8x128xf32>
      %c0_24 = arith.constant 0 : index
      %c0_25 = arith.constant 0 : index
      %c0_26 = arith.constant 0 : index
      %24 = vector.load %arg6[%c0_24, %c0_25, %c0_26] : memref<1x8x128xf32, #tpu.memory_space<vmem>>, vector<1x8x128xf32>
      tpu.vector_store %arg6[%c0_24, %c0_25, %c0_26], %23 {strides = array<i32>} : memref<1x8x128xf32, #tpu.memory_space<vmem>>, vector<1x8x128xf32>,
    } else {
    }
    %c0 = arith.constant 0 : index
    %c0_1 = arith.constant 0 : index
    %3 = vector.load %arg2[%c0, %c0_1] : memref<8x128xf32, #tpu.memory_space<vmem>>, vector<8x128xf32>
    %c0_2 = arith.constant 0 : index
    %c0_3 = arith.constant 0 : index
    %4 = vector.load %arg3[%c0_2, %c0_3] : memref<8x128xf32, #tpu.memory_space<vmem>>, vector<8x128xf32>
    %c0_4 = arith.constant 0 : index
    %c0_5 = arith.constant 0 : index
    %5 = vector.load %arg4[%c0_4, %c0_5] : memref<8x128xf32, #tpu.memory_space<vmem>>, vector<8x128xf32>
    %6 = arith.subf %3, %4 : vector<8x128xf32>
    %7 = math.absf %6 : vector<8x128xf32>
    %8 = arith.mulf %7, %5 : vector<8x128xf32>
    %c0_6 = arith.constant 0 : index
    %c0_7 = arith.constant 0 : index
    %c0_8 = arith.constant 0 : index
    %9 = vector.load %arg5[%c0_6, %c0_7, %c0_8] : memref<1x8x128xf32, #tpu.memory_space<vmem>>, vector<1x8x128xf32>
    %10 = vector.shape_cast %8 : vector<8x128xf32> to vector<1x8x128xf32>
    %cst = arith.constant dense<0.000000e+00> : vector<8x128xf32>
    %11 = vector.multi_reduction <add>, %10, %cst [0] : vector<1x8x128xf32> to vector<8x128xf32>
    %12 = vector.shape_cast %11 : vector<8x128xf32> to vector<1x8x128xf32>
    %13 = arith.addf %9, %12 : vector<1x8x128xf32>
    %c0_9 = arith.constant 0 : index
    %c0_10 = arith.constant 0 : index
    %c0_11 = arith.constant 0 : index
    %14 = vector.load %arg5[%c0_9, %c0_10, %c0_11] : memref<1x8x128xf32, #tpu.memory_space<vmem>>, vector<1x8x128xf32>
    tpu.vector_store %arg5[%c0_9, %c0_10, %c0_11], %13 {strides = array<i32>} : memref<1x8x128xf32, #tpu.memory_space<vmem>>, vector<1x8x128xf32>,
    %c0_12 = arith.constant 0 : index
    %c0_13 = arith.constant 0 : index
    %c0_14 = arith.constant 0 : index
    %15 = vector.load %arg6[%c0_12, %c0_13, %c0_14] : memref<1x8x128xf32, #tpu.memory_space<vmem>>, vector<1x8x128xf32>
    %16 = vector.shape_cast %5 : vector<8x128xf32> to vector<1x8x128xf32>
    %cst_15 = arith.constant dense<0.000000e+00> : vector<8x128xf32>
    %17 = vector.multi_reduction <add>, %16, %cst_15 [0] : vector<1x8x128xf32> to vector<8x128xf32>
    %18 = vector.shape_cast %17 : vector<8x128xf32> to vector<1x8x128xf32>
    %19 = arith.addf %15, %18 : vector<1x8x128xf32>
    %c0_16 = arith.constant 0 : index
    %c0_17 = arith.constant 0 : index
    %c0_18 = arith.constant 0 : index
    %20 = vector.load %arg6[%c0_16, %c0_17, %c0_18] : memref<1x8x128xf32, #tpu.memory_space<vmem>>, vector<1x8x128xf32>
    tpu.vector_store %arg6[%c0_16, %c0_17, %c0_18], %19 {strides = array<i32>} : memref<1x8x128xf32, #tpu.memory_space<vmem>>, vector<1x8x128xf32>,
    return
  }
  func.func @transform_0(%arg0: i32, %arg1: i32) -> (i32, i32) {
    %c1_i32 = arith.constant 1 : i32
    %0 = arith.muli %arg0, %c1_i32 : i32
    %1 = arith.addi %0, %arg1 : i32
    %c1_i32_0 = arith.constant 1 : i32
    %2 = arith.minsi %1, %c1_i32_0 : i32
    %c0_i32 = arith.constant 0 : i32
    %c0_i32_1 = arith.constant 0 : i32
    return %2, %c0_i32 : i32, i32
  }
  func.func @transform_1(%arg0: i32, %arg1: i32) -> (i32, i32) {
    %c1_i32 = arith.constant 1 : i32
    %0 = arith.muli %arg0, %c1_i32 : i32
    %1 = arith.addi %0, %arg1 : i32
    %c1_i32_0 = arith.constant 1 : i32
    %2 = arith.minsi %1, %c1_i32_0 : i32
    %c0_i32 = arith.constant 0 : i32
    %c0_i32_1 = arith.constant 0 : i32
    return %2, %c0_i32 : i32, i32
  }
  func.func @transform_2(%arg0: i32, %arg1: i32) -> (i32, i32) {
    %c1_i32 = arith.constant 1 : i32
    %0 = arith.muli %arg0, %c1_i32 : i32
    %1 = arith.addi %0, %arg1 : i32
    %c1_i32_0 = arith.constant 1 : i32
    %2 = arith.minsi %1, %c1_i32_0 : i32
    %c0_i32 = arith.constant 0 : i32
    %c0_i32_1 = arith.constant 0 : i32
    return %2, %c0_i32 : i32, i32
  }
  func.func @transform_3(%arg0: i32, %arg1: i32) -> (i32, i32, i32) {
    %c0_i32 = arith.constant 0 : i32
    %c0_i32_0 = arith.constant 0 : i32
    %c0_i32_1 = arith.constant 0 : i32
    return %arg0, %c0_i32, %c0_i32_0 : i32, i32, i32
  }
  func.func @transform_4(%arg0: i32, %arg1: i32) -> (i32, i32, i32) {
    %c0_i32 = arith.constant 0 : i32
    %c0_i32_0 = arith.constant 0 : i32
    %c0_i32_1 = arith.constant 0 : i32
    return %arg0, %c0_i32, %c0_i32_0 : i32, i32, i32
  }
}

</mosaic_0001>

<llo_original>
// kernel: tpu_custom_call.1
$region0: #{tpu_custom_call.1}
  #allocation0 [shape = 'u32[]', space=smem, size = 0x4, offset = 0x4, fixed_abs, tag = 'smem constant byte address 0x4 - core index']
  #allocation1 [shape = 'u32[144,128]{1,0:T(1,128)}', space=vmem, size = 0x12000, scoped, tag = 'internal scratch']
  %s0 = inlined_call_operand.hbm [shape: f32[16,128], index: 0, kind: input, shape index: {}]
  %s1 = inlined_call_operand.hbm [shape: f32[16,128], index: 1, kind: input, shape index: {}]
  %s2 = inlined_call_operand.hbm [shape: f32[16,128], index: 2, kind: input, shape index: {}]
  %s3 = inlined_call_operand.hbm [shape: f32[2,8,128], index: 3, kind: output, shape index: {0}]
  %s4 = inlined_call_operand.hbm [shape: f32[2,8,128], index: 4, kind: output, shape index: {1}]
  %5 = xla_tuple %s3, %s4
  %s6 = sld [smem:[#allocation0]]
  $region69: #{tpu_custom_call.1} parent=0
    _
  %s8 = ssub.s32 1, %s6
  %s9 = scalar_select 0, %s8, %s6
  $region1: #{tpu_custom_call.1} parent=0
    #allocation2 [shape = 'u8[8192]{0}', space=vmem, size = 0x2000, scoped, tag = 'input window, operand 0']
    #allocation3 [shape = 's32[2]{0}', space=sflag, size = 0x8, scoped, tag = 'scoped memory for tpu_custom_call.1']
    #allocation4 [shape = 's32[2]{0}', space=sflag, size = 0x8, scoped, tag = 'scoped memory for tpu_custom_call.1']
    #allocation5 [shape = 'u8[8192]{0}', space=vmem, size = 0x2000, scoped, tag = 'input window, operand 1']
    #allocation6 [shape = 's32[2]{0}', space=sflag, size = 0x8, scoped, tag = 'scoped memory for tpu_custom_call.1']
    #allocation7 [shape = 'u8[8192]{0}', space=vmem, size = 0x2000, scoped, tag = 'input window, operand 2']
    #allocation8 [shape = 'u8[8192]{0}', space=vmem, size = 0x2000, scoped, tag = 'output window, operand 0']
    #allocation9 [shape = 'u8[8192]{0}', space=vmem, size = 0x2000, scoped, tag = 'output window, operand 1']
    #allocation10 [shape = 's32[2]{0}', space=sflag, size = 0x8, scoped, tag = 'scoped memory for tpu_custom_call.1']
    %10 = vsyncpa [#allocation3], 0
    %s11 = scalar_lea.sflag [#allocation3], 1
    %12 = vsyncpa %s11, 0
    %13 = vsyncpa [#allocation6], 0
    %s14 = scalar_lea.sflag [#allocation6], 1
    %15 = vsyncpa %s14, 0
    %16 = vsyncpa [#allocation4], 0
    %s17 = scalar_lea.sflag [#allocation4], 1
    %18 = vsyncpa %s17, 0
    %19 = vsyncpa [#allocation10], 0
    %s20 = scalar_lea.sflag [#allocation10], 1
    %21 = vsyncpa %s20, 0
    loop: start=0, step=1, limit=4
    $region2: #{tpu_custom_call.1} parent=1 // loop_pre_header
      _
    $region3: #{tpu_custom_call.1} parent=1 // loop_header
      %s23 = sphi 0, %s27
      %p24 = scmp.ge.s32.totalorder %s23, 4
      %s30 = sphi 0, %s42
      %s31 = sphi 0, %s38
      %s32 = sphi 0, %s30
      %s33 = sphi 0, %s31
      %s34 = sphi 0, %s32
      %s35 = sphi 0, %s33
      %s51 = sphi 0, %s53
      %s54 = sphi 0, %s51
      %s55 = sphi 0, %s54
      %s71 = sphi 0, %s55
      %s83 = sphi 0, %s85
      %s86 = sphi 0, %s83
      %s87 = sphi 0, %s86
      %s103 = sphi 0, %s87
      %s115 = sphi 0, %s117
      %s118 = sphi 0, %s115
      %s119 = sphi 0, %s118
      %s135 = sphi 0, %s119
      %s141 = sphi 0, %s143
      %s144 = sphi 0, %s141
      %s145 = sphi 0, %s144
      %s161 = sphi 0, %s145
      %s167 = sphi 0, %s169
      %s170 = sphi 0, %s167
      %s171 = sphi 0, %s170
      %s187 = sphi 0, %s171
    $region4: #{tpu_custom_call.1} parent=1 // loop_header_branch
      %26 = sbr.rel (%p24) target = $region8
    $region5: #{tpu_custom_call.1} parent=1 // loop_body
      %s28 = ssub.s32 %s23, 1
      %s29 = ssub.s32 %s23, 2
      %s36 = sadd.s32 1, %s31
      %p37 = scmp.ge.s32.totalorder %s36, 1
      %s38 = scalar_select %p37, 0, %s36
      %s39 = sadd.s32 1, %s30
      %s40 = scalar_select %p37, %s39, %s30
      %p41 = scmp.ge.s32.totalorder %s40, 2
      %s42 = scalar_select %p41, 0, %s40
      %s43 = sadd.s32 %s30, %s31
      %p44 = scmp.lt.s32.totalorder %s43, 1
      %s45 = scalar_select %p44, %s43, 1
      %s46 = sadd.s32 %s42, %s38
      %p47 = scmp.lt.s32.totalorder %s46, 1
      %s48 = scalar_select %p47, %s46, 1
      %s49 = ssub.s32 %s45, %s48
      %p50 = scmp.eq.s32.totalorder %s49, 0
      %s52 = sadd.s32 %s51, 1
      %s53 = scalar_select %p50, %s51, %s52
      %p56 = pneg %p50
      %p57 = scmp.eq.s32.totalorder %s23, 1
      %p58 = por %p56, %p57
      %p59 = scmp.ne.s32.totalorder %s51, %s54
      %p60 = scmp.eq.s32.totalorder %s23, 0
      %p61 = por %p59, %p60
      %p62 = scmp.ne.s32.totalorder %s51, %s54
      %p63 = scmp.eq.s32.totalorder %s28, 1
      %p64 = por %p62, %p63
      %p65 = scmp.ne.s32.totalorder %s54, %s55
      %p66 = scmp.eq.s32.totalorder %s28, 0
      %p67 = por %p65, %p66
      %p68 = scmp.ne.s32.totalorder %s54, %s55
      %p69 = scmp.eq.s32.totalorder %s29, 1
      %p70 = por %p68, %p69
      %p72 = scmp.ne.s32.totalorder %s55, %s71
      %p73 = scmp.eq.s32.totalorder %s29, 0
      %p74 = por %p72, %p73
      %s75 = sadd.s32 %s30, %s31
      %p76 = scmp.lt.s32.totalorder %s75, 1
      %s77 = scalar_select %p76, %s75, 1
      %s78 = sadd.s32 %s42, %s38
      %p79 = scmp.lt.s32.totalorder %s78, 1
      %s80 = scalar_select %p79, %s78, 1
      %s81 = ssub.s32 %s77, %s80
      %p82 = scmp.eq.s32.totalorder %s81, 0
      %s84 = sadd.s32 %s83, 1
      %s85 = scalar_select %p82, %s83, %s84
      %p88 = pneg %p82
      %p89 = scmp.eq.s32.totalorder %s23, 1
      %p90 = por %p88, %p89
      %p91 = scmp.ne.s32.totalorder %s83, %s86
      %p92 = scmp.eq.s32.totalorder %s23, 0
      %p93 = por %p91, %p92
      %p94 = scmp.ne.s32.totalorder %s83, %s86
      %p95 = scmp.eq.s32.totalorder %s28, 1
      %p96 = por %p94, %p95
      %p97 = scmp.ne.s32.totalorder %s86, %s87
      %p98 = scmp.eq.s32.totalorder %s28, 0
      %p99 = por %p97, %p98
      %p100 = scmp.ne.s32.totalorder %s86, %s87
      %p101 = scmp.eq.s32.totalorder %s29, 1
      %p102 = por %p100, %p101
      %p104 = scmp.ne.s32.totalorder %s87, %s103
      %p105 = scmp.eq.s32.totalorder %s29, 0
      %p106 = por %p104, %p105
      %s107 = sadd.s32 %s30, %s31
      %p108 = scmp.lt.s32.totalorder %s107, 1
      %s109 = scalar_select %p108, %s107, 1
      %s110 = sadd.s32 %s42, %s38
      %p111 = scmp.lt.s32.totalorder %s110, 1
      %s112 = scalar_select %p111, %s110, 1
      %s113 = ssub.s32 %s109, %s112
      %p114 = scmp.eq.s32.totalorder %s113, 0
      %s116 = sadd.s32 %s115, 1
      %s117 = scalar_select %p114, %s115, %s116
      %p120 = pneg %p114
      %p121 = scmp.eq.s32.totalorder %s23, 1
      %p122 = por %p120, %p121
      %p123 = scmp.ne.s32.totalorder %s115, %s118
      %p124 = scmp.eq.s32.totalorder %s23, 0
      %p125 = por %p123, %p124
      %p126 = scmp.ne.s32.totalorder %s115, %s118
      %p127 = scmp.eq.s32.totalorder %s28, 1
      %p128 = por %p126, %p127
      %p129 = scmp.ne.s32.totalorder %s118, %s119
      %p130 = scmp.eq.s32.totalorder %s28, 0
      %p131 = por %p129, %p130
      %p132 = scmp.ne.s32.totalorder %s118, %s119
      %p133 = scmp.eq.s32.totalorder %s29, 1
      %p134 = por %p132, %p133
      %p136 = scmp.ne.s32.totalorder %s119, %s135
      %p137 = scmp.eq.s32.totalorder %s29, 0
      %p138 = por %p136, %p137
      %s139 = ssub.s32 %s30, %s42
      %p140 = scmp.eq.s32.totalorder %s139, 0
      %s142 = sadd.s32 %s141, 1
      %s143 = scalar_select %p140, %s141, %s142
      %p146 = pneg %p140
      %p147 = scmp.eq.s32.totalorder %s23, 1
      %p148 = por %p146, %p147
      %p149 = scmp.ne.s32.totalorder %s141, %s144
      %p150 = scmp.eq.s32.totalorder %s23, 0
      %p151 = por %p149, %p150
      %p152 = scmp.ne.s32.totalorder %s141, %s144
      %p153 = scmp.eq.s32.totalorder %s28, 1
      %p154 = por %p152, %p153
      %p155 = scmp.ne.s32.totalorder %s144, %s145
      %p156 = scmp.eq.s32.totalorder %s28, 0
      %p157 = por %p155, %p156
      %p158 = scmp.ne.s32.totalorder %s144, %s145
      %p159 = scmp.eq.s32.totalorder %s29, 1
      %p160 = por %p158, %p159
      %p162 = scmp.ne.s32.totalorder %s145, %s161
      %p163 = scmp.eq.s32.totalorder %s29, 0
      %p164 = por %p162, %p163
      %s165 = ssub.s32 %s30, %s42
      %p166 = scmp.eq.s32.totalorder %s165, 0
      %s168 = sadd.s32 %s167, 1
      %s169 = scalar_select %p166, %s167, %s168
      %p172 = pneg %p166
      %p173 = scmp.eq.s32.totalorder %s23, 1
      %p174 = por %p172, %p173
      %p175 = scmp.ne.s32.totalorder %s167, %s170
      %p176 = scmp.eq.s32.totalorder %s23, 0
      %p177 = por %p175, %p176
      %p178 = scmp.ne.s32.totalorder %s167, %s170
      %p179 = scmp.eq.s32.totalorder %s28, 1
      %p180 = por %p178, %p179
      %p181 = scmp.ne.s32.totalorder %s170, %s171
      %p182 = scmp.eq.s32.totalorder %s28, 0
      %p183 = por %p181, %p182
      %p184 = scmp.ne.s32.totalorder %s170, %s171
      %p185 = scmp.eq.s32.totalorder %s29, 1
      %p186 = por %p184, %p185
      %p188 = scmp.ne.s32.totalorder %s171, %s187
      %p189 = scmp.eq.s32.totalorder %s29, 0
      %p190 = por %p188, %p189
      %p191 = scmp.le.s32.totalorder 1, %s23
      %p192 = scmp.lt.s32.totalorder %s23, 3
      %p193 = pnand %p191, %p192
      %p194 = pneg %p193
      // Predicated region
      $region9: #{tpu_custom_call.1} parent=5 // pred_check
        _
      $region10: #{tpu_custom_call.1} parent=5 // pred_check_branch
        %196 = sbr.rel (%p193) target = $region12
      $region11: #{tpu_custom_call.1} parent=5 // pred_region
        %s197 = ssub.s32 %s23, 1
      $region12: #{tpu_custom_call.1} parent=5 // pred_fallthru
        _
      %p198 = scmp.lt.s32.totalorder %s23, 2
      // Predicated region
      $region13: #{tpu_custom_call.1} parent=5 // pred_check
        %p199 = pneg %p198
      $region14: #{tpu_custom_call.1} parent=5 // pred_check_branch
        %201 = sbr.rel (%p199) target = $region16
      $region15: #{tpu_custom_call.1} parent=5 // pred_region
        // Predicated region
        $region17: #{tpu_custom_call.1} parent=15 // pred_check
          %p202 = pneg %p61
        $region18: #{tpu_custom_call.1} parent=15 // pred_check_branch
          %204 = sbr.rel (%p202) target = $region20
        $region19: #{tpu_custom_call.1} parent=15 // pred_region
          %s205 = sand.u32 %s51, 1
          %s206 = scalar_lea.sflag [#allocation3], %s205
          %s207 = sand.u32 %s51, 1
          %s208 = smul.addr %s207, 8
          %s209 = scalar_lea.vmem [#allocation2], %s208
          %s210 = sadd.s32 %s30, %s31
          %p211 = scmp.lt.s32.totalorder %s210, 1
          %s212 = scalar_select %p211, %s210, 1
          %s214 = ssub.s32 128, 128
          %215 = vsyncadd %s206, %s214
          %s216 = smul.addr %s212, 128
          %s217 = scalar_lea.hbm %s0, %s216
          %s219 = sshll.u32 %s209, 4
          %s220 = int_to_ptr.vmem [resolvable:$true] %s219
          %222 = dma.hbm_to_vmem [thread:$0]  %s217, 128, %s220, %s206
        $region20: #{tpu_custom_call.1} parent=15 // pred_fallthru
          _
        // Predicated region
        $region21: #{tpu_custom_call.1} parent=15 // pred_check
          %p223 = pneg %p93
        $region22: #{tpu_custom_call.1} parent=15 // pred_check_branch
          %225 = sbr.rel (%p223) target = $region24
        $region23: #{tpu_custom_call.1} parent=15 // pred_region
          %s226 = sand.u32 %s23, 1
          %s227 = scalar_lea.sflag [#allocation6], %s226
          %s228 = sand.u32 %s83, 1
          %s229 = smul.addr %s228, 8
          %s230 = scalar_lea.vmem [#allocation5], %s229
          %s231 = sadd.s32 %s30, %s31
          %p232 = scmp.lt.s32.totalorder %s231, 1
          %s233 = scalar_select %p232, %s231, 1
          %s235 = ssub.s32 128, 128
          %236 = vsyncadd %s227, %s235
          %s237 = smul.addr %s233, 128
          %s238 = scalar_lea.hbm %s1, %s237
          %s240 = sshll.u32 %s230, 4
          %s241 = int_to_ptr.vmem [resolvable:$true] %s240
          %243 = dma.hbm_to_vmem [thread:$0]  %s238, 128, %s241, %s227
        $region24: #{tpu_custom_call.1} parent=15 // pred_fallthru
          _
        // Predicated region
        $region25: #{tpu_custom_call.1} parent=15 // pred_check
          %p244 = pneg %p125
        $region26: #{tpu_custom_call.1} parent=15 // pred_check_branch
          %246 = sbr.rel (%p244) target = $region28
        $region27: #{tpu_custom_call.1} parent=15 // pred_region
          %s247 = sand.u32 %s23, 1
          %s248 = scalar_lea.sflag [#allocation6], %s247
          %s249 = sand.u32 %s115, 1
          %s250 = smul.addr %s249, 8
          %s251 = scalar_lea.vmem [#allocation7], %s250
          %s252 = sadd.s32 %s30, %s31
          %p253 = scmp.lt.s32.totalorder %s252, 1
          %s254 = scalar_select %p253, %s252, 1
          %s256 = ssub.s32 128, 128
          %257 = vsyncadd %s248, %s256
          %s258 = smul.addr %s254, 128
          %s259 = scalar_lea.hbm %s2, %s258
          %s261 = sshll.u32 %s251, 4
          %s262 = int_to_ptr.vmem [resolvable:$true] %s261
          %264 = dma.hbm_to_vmem [thread:$0]  %s259, 128, %s262, %s248
        $region28: #{tpu_custom_call.1} parent=15 // pred_fallthru
          _
      $region16: #{tpu_custom_call.1} parent=5 // pred_fallthru
        _
      %p265 = scmp.le.s32.totalorder 1, %s23
      %p266 = scmp.lt.s32.totalorder %s23, 3
      %p267 = pnand %p265, %p266
      %p268 = pneg %p267
      // Predicated region
      $region29: #{tpu_custom_call.1} parent=5 // pred_check
        _
      $region30: #{tpu_custom_call.1} parent=5 // pred_check_branch
        %270 = sbr.rel (%p267) target = $region32
      $region31: #{tpu_custom_call.1} parent=5 // pred_region
        %s271 = ssub.s32 %s23, 1
        %s272 = sand.u32 %s54, 1
        %s273 = scalar_lea.sflag [#allocation3], %s272
        %s274 = sand.u32 %s54, 1
        %s275 = smul.addr %s274, 8
        %s276 = scalar_lea.vmem [#allocation2], %s275
        // Predicated region
        $region33: #{tpu_custom_call.1} parent=31 // pred_check
          %p277 = pneg %p67
        $region34: #{tpu_custom_call.1} parent=31 // pred_check_branch
          %279 = sbr.rel (%p277) target = $region36
        $region35: #{tpu_custom_call.1} parent=31 // pred_region
          %280 = dma.done %s273, 128
        $region36: #{tpu_custom_call.1} parent=31 // pred_fallthru
          _
        %s281 = sand.u32 %s28, 1
        %s282 = scalar_lea.sflag [#allocation6], %s281
        %s283 = sand.u32 %s86, 1
        %s284 = smul.addr %s283, 8
        %s285 = scalar_lea.vmem [#allocation5], %s284
        // Predicated region
        $region37: #{tpu_custom_call.1} parent=31 // pred_check
          %p286 = pneg %p99
        $region38: #{tpu_custom_call.1} parent=31 // pred_check_branch
          %288 = sbr.rel (%p286) target = $region40
        $region39: #{tpu_custom_call.1} parent=31 // pred_region
          %289 = dma.done %s282, 128
        $region40: #{tpu_custom_call.1} parent=31 // pred_fallthru
          _
        %s290 = sand.u32 %s28, 1
        %s291 = scalar_lea.sflag [#allocation6], %s290
        %s292 = sand.u32 %s118, 1
        %s293 = smul.addr %s292, 8
        %s294 = scalar_lea.vmem [#allocation7], %s293
        // Predicated region
        $region41: #{tpu_custom_call.1} parent=31 // pred_check
          %p295 = pneg %p131
        $region42: #{tpu_custom_call.1} parent=31 // pred_check_branch
          %297 = sbr.rel (%p295) target = $region44
        $region43: #{tpu_custom_call.1} parent=31 // pred_region
          %298 = dma.done %s291, 128
        $region44: #{tpu_custom_call.1} parent=31 // pred_fallthru
          _
        %s299 = sand.u32 %s54, 1
        %s300 = scalar_lea.sflag [#allocation3], %s299
        %s301 = sand.u32 %s54, 1
        %s302 = smul.addr %s301, 8
        %s303 = scalar_lea.vmem [#allocation2], %s302
        %p304 = pneg %p67
        %p305 = pneg %p64
        %s306 = sand.u32 %s28, 1
        %s307 = scalar_lea.sflag [#allocation6], %s306
        %s308 = sand.u32 %s86, 1
        %s309 = smul.addr %s308, 8
        %s310 = scalar_lea.vmem [#allocation5], %s309
        %p311 = pneg %p99
        %p312 = pneg %p96
        %s313 = sand.u32 %s28, 1
        %s314 = scalar_lea.sflag [#allocation6], %s313
        %s315 = sand.u32 %s118, 1
        %s316 = smul.addr %s315, 8
        %s317 = scalar_lea.vmem [#allocation7], %s316
        %p318 = pneg %p131
        %p319 = pneg %p128
        %p320 = pneg %p157
        %p321 = pneg %p154
        %s322 = sand.u32 %s144, 1
        %s323 = scalar_lea.sflag [#allocation4], %s322
        %s324 = sand.u32 %s144, 1
        %s325 = smul.addr %s324, 8
        %s326 = scalar_lea.vmem [#allocation8], %s325
        %p327 = pneg %p183
        %p328 = pneg %p180
        %s329 = sand.u32 %s170, 1
        %s330 = scalar_lea.sflag [#allocation10], %s329
        %s331 = sand.u32 %s170, 1
        %s332 = smul.addr %s331, 8
        %s333 = scalar_lea.vmem [#allocation9], %s332
        %s334 = sadd.s32 %s32, %s33
        %p335 = scmp.lt.s32.totalorder %s334, 1
        %s336 = scalar_select %p335, %s334, 1
        %s337 = sadd.s32 %s32, %s33
        %p338 = scmp.lt.s32.totalorder %s337, 1
        %s339 = scalar_select %p338, %s337, 1
        %s340 = sadd.s32 %s32, %s33
        %p341 = scmp.lt.s32.totalorder %s340, 1
        %s342 = scalar_select %p341, %s340, 1
        %p343 = scmp.eq.s32.totalorder %s33, 0
        // Predicated region
        $region45: #{tpu_custom_call.1} parent=31 // pred_check
          %p344 = pneg %p343
        $region46: #{tpu_custom_call.1} parent=31 // pred_check_branch
          %346 = sbr.rel (%p344) target = $region48
        $region47: #{tpu_custom_call.1} parent=31 // pred_region
          %347 = vst [vmem:[%s326] sm:$0xff] 0.0
          %348 = vst [vmem:[%s333] sm:$0xff] 0.0
        $region48: #{tpu_custom_call.1} parent=31 // pred_fallthru
          _
        %v349 = vld [vmem:[%s276] sm:$0xff]
        %v350 = vld [vmem:[%s285] sm:$0xff]
        %v351 = vld [vmem:[%s294] sm:$0xff]
        %v352 = vsub.f32 %v349, %v350
        %v353 = vand.u32 2147483647, %v352
        %v354 = vmul.f32 %v353, %v351
        %v355 = vld [vmem:[%s326] sm:$0xff]
        %v356 = vadd.f32 %v354, 0.0
        %v357 = vadd.f32 %v355, %v356
        %358 = vst [vmem:[%s326] sm:$0xff] %v357
        %v359 = vld [vmem:[%s333] sm:$0xff]
        %v360 = vadd.f32 %v351, 0.0
        %v361 = vadd.f32 %v359, %v360
        %362 = vst [vmem:[%s333] sm:$0xff] %v361
        %s363 = sand.u32 %s144, 1
        %s364 = scalar_lea.sflag [#allocation4], %s363
        %s365 = sand.u32 %s144, 1
        %s366 = smul.addr %s365, 8
        %s367 = scalar_lea.vmem [#allocation8], %s366
        %s368 = sand.u32 %s170, 1
        %s369 = scalar_lea.sflag [#allocation10], %s368
        %s370 = sand.u32 %s170, 1
        %s371 = smul.addr %s370, 8
        %s372 = scalar_lea.vmem [#allocation9], %s371
        // Predicated region
        $region49: #{tpu_custom_call.1} parent=31 // pred_check
          %p373 = pneg %p154
        $region50: #{tpu_custom_call.1} parent=31 // pred_check_branch
          %375 = sbr.rel (%p373) target = $region52
        $region51: #{tpu_custom_call.1} parent=31 // pred_region
          %s377 = ssub.s32 128, 128
          %378 = vsyncadd %s364, %s377
          %s379 = smul.addr %s32, 128
          %s380 = scalar_lea.hbm %s3, %s379
          %s382 = sshll.u32 %s367, 4
          %s383 = int_to_ptr.vmem [resolvable:$true] %s382
          %385 = dma.vmem_to_hbm [thread:$0]  %s383, 128, %s380, %s364
        $region52: #{tpu_custom_call.1} parent=31 // pred_fallthru
          _
        // Predicated region
        $region53: #{tpu_custom_call.1} parent=31 // pred_check
          %p386 = pneg %p180
        $region54: #{tpu_custom_call.1} parent=31 // pred_check_branch
          %388 = sbr.rel (%p386) target = $region56
        $region55: #{tpu_custom_call.1} parent=31 // pred_region
          %s390 = ssub.s32 128, 128
          %391 = vsyncadd %s369, %s390
          %s392 = smul.addr %s32, 128
          %s393 = scalar_lea.hbm %s4, %s392
          %s395 = sshll.u32 %s372, 4
          %s396 = int_to_ptr.vmem [resolvable:$true] %s395
          %398 = dma.vmem_to_hbm [thread:$0]  %s396, 128, %s393, %s369
        $region56: #{tpu_custom_call.1} parent=31 // pred_fallthru
          _
      $region32: #{tpu_custom_call.1} parent=5 // pred_fallthru
        _
      %p399 = scmp.le.s32.totalorder 2, %s23
      // Predicated region
      $region57: #{tpu_custom_call.1} parent=5 // pred_check
        %p400 = pneg %p399
      $region58: #{tpu_custom_call.1} parent=5 // pred_check_branch
        %402 = sbr.rel (%p400) target = $region60
      $region59: #{tpu_custom_call.1} parent=5 // pred_region
        %s403 = ssub.s32 %s23, 2
        // Predicated region
        $region61: #{tpu_custom_call.1} parent=59 // pred_check
          %p404 = pneg %p160
        $region62: #{tpu_custom_call.1} parent=59 // pred_check_branch
          %406 = sbr.rel (%p404) target = $region64
        $region63: #{tpu_custom_call.1} parent=59 // pred_region
          %s407 = sand.u32 %s145, 1
          %s408 = scalar_lea.sflag [#allocation4], %s407
          %s409 = sand.u32 %s145, 1
          %s410 = smul.addr %s409, 8
          %s411 = scalar_lea.vmem [#allocation8], %s410
          %412 = dma.done %s408, 128
        $region64: #{tpu_custom_call.1} parent=59 // pred_fallthru
          _
        // Predicated region
        $region65: #{tpu_custom_call.1} parent=59 // pred_check
          %p413 = pneg %p186
        $region66: #{tpu_custom_call.1} parent=59 // pred_check_branch
          %415 = sbr.rel (%p413) target = $region68
        $region67: #{tpu_custom_call.1} parent=59 // pred_region
          %s416 = sand.u32 %s171, 1
          %s417 = scalar_lea.sflag [#allocation10], %s416
          %s418 = sand.u32 %s171, 1
          %s419 = smul.addr %s418, 8
          %s420 = scalar_lea.vmem [#allocation9], %s419
          %421 = dma.done %s417, 128
        $region68: #{tpu_custom_call.1} parent=59 // pred_fallthru
          _
      $region60: #{tpu_custom_call.1} parent=5 // pred_fallthru
        _
    $region6: #{tpu_custom_call.1} parent=1 // loop_footer
      %s27 = sadd.s32 1, %s23
    $region7: #{tpu_custom_call.1} parent=1 // loop_footer_branch
      %22 = sbr.rel target = $region3
    $region8: #{tpu_custom_call.1} parent=1 // loop_exit
      _
    %422 = vsyncpa [#allocation3], 1
    %s423 = scalar_lea.sflag [#allocation3], 1
    %424 = vsyncpa %s423, 1
    %425 = vsyncpa [#allocation6], 1
    %s426 = scalar_lea.sflag [#allocation6], 1
    %427 = vsyncpa %s426, 1
    %428 = vsyncpa [#allocation4], 1
    %s429 = scalar_lea.sflag [#allocation4], 1
    %430 = vsyncpa %s429, 1
    %431 = vsyncpa [#allocation10], 1
    %s432 = scalar_lea.sflag [#allocation10], 1
    %433 = vsyncpa %s432, 1

</llo_original>
